<compile_context>
chip_gen: v7x
topology: tpu7x:2x2x1
jax: 0.10.0
libtpu: 0.0.40
codegen_flags: <defaults>
</compile_context>

<pallas_src>
import functools

import numpy as np
import jax
import jax.numpy as jnp
from jax.experimental import pallas as pl
from jax.experimental.pallas import tpu as pltpu


def _round_up(n, m):
    return ((n + m - 1) // m) * m


def _pick_tile(total, candidates=(1024, 896, 768, 640, 512, 384, 256, 128)):
    """total is a multiple of 128; pick (tile, padded_total) minimizing padding,
    preferring larger tiles on ties."""
    best_key, best = None, None
    for t in candidates:
        padded = _round_up(total, t)
        key = (padded, -t)
        if best_key is None or key < best_key:
            best_key, best = key, (t, padded)
    return best


def _pick_m(M):
    """Row-tile for the output/weight M dimension."""
    Mp = _round_up(M, 8)
    if Mp <= 512:
        return Mp, Mp                  # single resident row tile
    tm = 256                           # full MXU rows on v6e/v7x (v5e: 2 pushes, still fine)
    return _round_up(M, tm), tm


def _cyclic_shifts(NNsites, Nsites):
    """Return per-neighbor lattice shifts if every NNsites row is a cyclic shift of
    arange(Nsites) (periodic lattice), else None.  Needs concrete NNsites."""
    try:
        nn = np.asarray(jax.device_get(NNsites))
    except Exception:
        return None
    if nn.ndim != 2 or nn.shape[1] != Nsites:
        return None
    base = np.arange(Nsites, dtype=np.int64)
    shifts = []
    for row in nn.astype(np.int64):
        sh = int(row[0]) % Nsites
        if not np.array_equal(row % Nsites, (base + sh) % Nsites):
            return None
        shifts.append(sh)
    return shifts


# ---------------------------------------------------------------------------
# Fused path: neighbor gather built in-kernel from a VMEM-resident input.
# ---------------------------------------------------------------------------
def _gconv_fused_kernel(gw_ref, bias_ref, in_ref, out_ref, *, shifts, sp, tm):
    # gw_ref:   (Mp, Kf)   bf16  whole rotated-weight matrix, VMEM-resident
    # bias_ref: (Mp, 1)    f32   group-repeated bias, VMEM-resident
    # in_ref:   (C8, Se)   bf16  per-batch input with periodic wrap halo (batch squeezed)
    # out_ref:  (tm, Sp)   f32
    # Fused neighbor gather: NNsites rows are cyclic shifts, so the rearranged-input
    # tile is built from static lane-offset slices of the (un-inflated) input.
    x = jnp.concatenate([in_ref[:, sh:sh + sp] for sh in shifts], axis=0)   # (N_ngb*C8, Sp)
    if tm == gw_ref.shape[0]:
        gw = gw_ref[...]
        gb = bias_ref[...]
    else:
        r0 = pl.multiple_of(pl.program_id(1) * tm, 8)
        gw = gw_ref[pl.ds(r0, tm), :]
        gb = bias_ref[pl.ds(r0, tm), :]
    out_ref[...] = (jnp.dot(gw, x, preferred_element_type=jnp.float32) + gb
                    ).astype(out_ref.dtype)


def _gconv_fused(In, gw4, Gbias, shifts, *, Mp, tm, Sp, Se, C8, compute_dtype):
    B, C, S = In.shape
    O, Ng, N_ngb, _ = gw4.shape
    M = O * Ng
    Kf = N_ngb * C8
    max_shift = max(shifts)

    # Rotated weights, (n, c)-ordered columns padded to C8 channels.
    GW = gw4
    if C8 != C:
        GW = jnp.pad(GW, ((0, 0), (0, 0), (0, 0), (0, C8 - C)))
    GW = GW.reshape(M, Kf).astype(compute_dtype)
    if Mp != M:
        GW = jnp.pad(GW, ((0, Mp - M), (0, 0)))
        Gbias = jnp.pad(Gbias, ((0, Mp - M), (0, 0)))

    # Input with a periodic wrap halo so static in-kernel slices never run off the end.
    In_c = In.astype(compute_dtype)
    if max_shift > 0:
        In_c = jnp.concatenate([In_c, In_c[:, :, :max_shift]], axis=2)
    pad_c = C8 - C
    pad_s = Se - In_c.shape[2]
    if pad_c or pad_s:
        In_c = jnp.pad(In_c, ((0, 0), (0, pad_c), (0, pad_s)))

    n_m = Mp // tm
    kernel = functools.partial(
        _gconv_fused_kernel, shifts=tuple(int(s) for s in shifts), sp=Sp, tm=tm)

    out = pl.pallas_call(
        kernel,
        out_shape=jax.ShapeDtypeStruct((B, Mp, Sp), jnp.float32),
        grid_spec=pltpu.PrefetchScalarGridSpec(
            num_scalar_prefetch=0,
            grid=(B, n_m),
            in_specs=[
                pl.BlockSpec((Mp, Kf), lambda b, i: (0, 0)),      # resident rotated weights
                pl.BlockSpec((Mp, 1), lambda b, i: (0, 0)),       # resident bias
                pl.BlockSpec((None, C8, Se), lambda b, i: (b, 0, 0)),  # per-batch input
            ],
            out_specs=pl.BlockSpec((None, tm, Sp), lambda b, i: (b, i, 0)),
        ),
        compiler_params=pltpu.CompilerParams(
            dimension_semantics=("parallel", "parallel"),
            vmem_limit_bytes=48 * 1024 * 1024,
        ),
        cost_estimate=pl.CostEstimate(
            flops=int(2 * B * Mp * Kf * Sp), transcendentals=0,
            bytes_accessed=int(GW.size * GW.dtype.itemsize + Gbias.size * 4
                               + In_c.size * In_c.dtype.itemsize + B * Mp * Sp * 4)),
    )(GW, Gbias, In_c)
    return out  # (B, Mp, Sp) f32


# ---------------------------------------------------------------------------
# Fallback path: materialize X in HBM and run a tiled matmul.
# ---------------------------------------------------------------------------
def _mm_bias_kernel(gw_ref, bias_ref, x_ref, out_ref):
    # Single-K-step fast path: no scratch accumulator, direct matmul + bias write.
    out_ref[...] = (jnp.dot(gw_ref[...], x_ref[...], preferred_element_type=jnp.float32)
                    + bias_ref[...]).astype(out_ref.dtype)


def _mm_acc_kernel(gw_ref, bias_ref, x_ref, out_ref, acc_ref):
    @pl.when(pl.program_id(3) == 0)
    def _init():
        acc_ref[...] = jnp.zeros_like(acc_ref)

    acc_ref[...] += jnp.dot(gw_ref[...], x_ref[...], preferred_element_type=jnp.float32)

    @pl.when(pl.program_id(3) == pl.num_programs(3) - 1)
    def _finalize():
        out_ref[...] = (acc_ref[...] + bias_ref[...]).astype(out_ref.dtype)


def _gconv_matmul(In, gw4, Gbias, NNsites, shifts, *, compute_dtype):
    B, C, S = In.shape
    O, Ng, N_ngb, _ = gw4.shape
    M, K = O * Ng, N_ngb * C

    GW = gw4.reshape(M, K).astype(compute_dtype)

    In_c = In.astype(compute_dtype)
    if shifts is not None:
        # Periodic lattice: lane-contiguous rolls instead of a minor-dim gather.
        X = jnp.stack([jnp.roll(In_c, -sh, axis=2) for sh in shifts], axis=1)   # (B, N, C, S)
    else:
        X = jnp.transpose(In_c[:, :, NNsites], (0, 2, 1, 3))                    # (B, N, C, S)
    X = X.reshape(B, K, S)

    # --- tile geometry ---
    Mp, tm = _pick_m(M)
    Sp = _round_up(S, 128)
    if K <= 512:
        Kp = _round_up(K, 16)        # bf16 sublane packing; zero rows are numerically free
        tk = Kp
    else:
        tk, Kp = _pick_tile(_round_up(K, 128), candidates=(512, 384, 256, 128))

    # Fold batch into the lane dimension when per-batch work is small: bigger MXU N,
    # fewer effective weight reloads, and one lane-dense output slab.
    fold = Sp <= 512
    lanes = B * Sp if fold else Sp
    ts, lanes_p = _pick_tile(lanes)

    if Mp != M:
        GW = jnp.pad(GW, ((0, Mp - M), (0, 0)))
        Gbias = jnp.pad(Gbias, ((0, Mp - M), (0, 0)))
    if Kp != K:
        GW = jnp.pad(GW, ((0, 0), (0, Kp - K)))
        X = jnp.pad(X, ((0, 0), (0, Kp - K), (0, 0)))

    if fold:
        if Sp != S:
            X = jnp.pad(X, ((0, 0), (0, 0), (0, Sp - S)))
        X = jnp.transpose(X, (1, 0, 2)).reshape(1, Kp, B * Sp)
        if lanes_p != B * Sp:
            X = jnp.pad(X, ((0, 0), (0, 0), (0, lanes_p - B * Sp)))
        Bdim = 1
    else:
        if lanes_p != S:
            X = jnp.pad(X, ((0, 0), (0, 0), (0, lanes_p - S)))
        Bdim = B

    n_m = Mp // tm
    n_s = lanes_p // ts
    n_k = Kp // tk

    cost = pl.CostEstimate(
        flops=int(2 * B * Mp * Kp * Sp), transcendentals=0,
        bytes_accessed=int(GW.size * GW.dtype.itemsize + Gbias.size * 4
                           + X.size * X.dtype.itemsize + Bdim * Mp * lanes_p * 4))
    cparams = pltpu.CompilerParams(
        dimension_semantics=("parallel", "parallel", "parallel")
        + (("arbitrary",) if n_k > 1 else ()),
        vmem_limit_bytes=32 * 1024 * 1024)

    if n_k == 1:
        out = pl.pallas_call(
            _mm_bias_kernel,
            out_shape=jax.ShapeDtypeStruct((Bdim, Mp, lanes_p), jnp.float32),
            grid_spec=pltpu.PrefetchScalarGridSpec(
                num_scalar_prefetch=0,
                grid=(Bdim, n_m, n_s),
                in_specs=[
                    pl.BlockSpec((tm, tk), lambda b, i, j: (i, 0)),
                    pl.BlockSpec((tm, 1), lambda b, i, j: (i, 0)),
                    pl.BlockSpec((None, tk, ts), lambda b, i, j: (b, 0, j)),
                ],
                out_specs=pl.BlockSpec((None, tm, ts), lambda b, i, j: (b, i, j)),
            ),
            compiler_params=cparams, cost_estimate=cost,
        )(GW, Gbias, X)
    else:
        out = pl.pallas_call(
            _mm_acc_kernel,
            out_shape=jax.ShapeDtypeStruct((Bdim, Mp, lanes_p), jnp.float32),
            grid_spec=pltpu.PrefetchScalarGridSpec(
                num_scalar_prefetch=0,
                grid=(Bdim, n_m, n_s, n_k),
                in_specs=[
                    pl.BlockSpec((tm, tk), lambda b, i, j, k: (i, k)),
                    pl.BlockSpec((tm, 1), lambda b, i, j, k: (i, 0)),
                    pl.BlockSpec((None, tk, ts), lambda b, i, j, k: (b, k, j)),
                ],
                out_specs=pl.BlockSpec((None, tm, ts), lambda b, i, j, k: (b, i, j)),
                scratch_shapes=[pltpu.VMEM((tm, ts), jnp.float32)],
            ),
            compiler_params=cparams, cost_estimate=cost,
        )(GW, Gbias, X)

    if fold:
        out = jnp.transpose(out[0, :, :B * Sp].reshape(Mp, B, Sp), (1, 0, 2))
    return out  # (B, Mp, >=Sp) f32


# ---------------------------------------------------------------------------
# Public entry point.
# ---------------------------------------------------------------------------
def gconv_forward(In, Psi, bias, GnnPerms, NNsites, *, compute_dtype=jnp.bfloat16):
    """Group-equivariant conv forward.

    In:       (Nbatch, NchIn, Nsites)  float32
    Psi:      (NchOut, NchIn, N_ngb)   float32
    bias:     (NchOut, 1)              float32
    GnnPerms: (Ng, N_ngb)              int32
    NNsites:  (N_ngb, Nsites)          int32
    returns:  (Nbatch, NchOut, Ng, Nsites) float32
    """
    Nbatch, NchIn, Nsites = In.shape
    NchOut, _, N_ngb = Psi.shape
    Ng = GnnPerms.shape[0]
    M = NchOut * Ng

    # Rotated weights (kept 4-D here; column order is (n, c)):
    #   gw4[o, g, n, c] = Psi[o, c, GnnPerms[g, n]]
    gw4 = jnp.transpose(Psi[:, :, GnnPerms], (0, 2, 3, 1))        # (O, Ng, N_ngb, C)
    # Group-repeated bias: Gbias[o*Ng + g] = bias[o]
    Gbias = jnp.repeat(bias, Ng, axis=0).astype(jnp.float32)      # (M, 1)

    shifts = _cyclic_shifts(NNsites, Nsites)

    fused = False
    if shifts is not None:
        C8 = _round_up(NchIn, 8)            # aligned channel blocks for the in-kernel concat
        Kf = N_ngb * C8
        Mp, tm = _pick_m(M)
        Sp = _round_up(Nsites, 128)
        max_shift = max(shifts)
        Se = _round_up(Sp + max_shift, 128)
        vmem_est = 2 * (Mp * Kf * 2 + Mp * 4 + C8 * Se * 2 + tm * Sp * 4 + Kf * Sp * 2)
        fused = vmem_est <= 24 * 1024 * 1024

    if fused:
        out3 = _gconv_fused(In, gw4, Gbias, shifts, Mp=Mp, tm=tm, Sp=Sp, Se=Se, C8=C8,
                            compute_dtype=compute_dtype)
    else:
        out3 = _gconv_matmul(In, gw4, Gbias, NNsites, shifts, compute_dtype=compute_dtype)

    if out3.shape[1] != M or out3.shape[2] != Nsites:
        out3 = out3[:, :M, :Nsites]          # drop zero padding only when it exists
    return out3.reshape(Nbatch, NchOut, Ng, Nsites)


# ---------------------------------------------------------------------------
# Self-test.
# ---------------------------------------------------------------------------
if __name__ == "__main__":
    key = jax.random.PRNGKey(0)

    def run_case(name, Nbatch, NchIn, NchOut, Nsites, N_ngb, Ng, NNsites, case_key,
                 check_f32=False):
        k1, k2, k3 = jax.random.split(case_key, 3)
        # Parameters ~ Normal(mean=1.0, std=0.1), as in the PyTorch __init__.
        Psi = 1.0 + 0.1 * jax.random.normal(k1, (NchOut, NchIn, N_ngb), dtype=jnp.float32)
        bias = 1.0 + 0.1 * jax.random.normal(k2, (NchOut, 1), dtype=jnp.float32)
        In = jax.random.normal(k3, (Nbatch, NchIn, Nsites), dtype=jnp.float32)
        # GnnPerms: permutations of the stencil (site 0 fixed, neighbors cyclically permuted).
        neigh = jnp.arange(1, N_ngb, dtype=jnp.int32)
        GnnPerms = jnp.stack(
            [jnp.concatenate([jnp.zeros((1,), jnp.int32), jnp.roll(neigh, g)])
             for g in range(Ng)], axis=0)

        out = gconv_forward(In, Psi, bias, GnnPerms, NNsites)
        out = jax.block_until_ready(out)
        assert out.shape == (Nbatch, NchOut, Ng, Nsites), (name, out.shape)

        # Tight reference: exact module semantics with the same bf16 input quantization.
        Psi_q = Psi.astype(jnp.bfloat16).astype(jnp.float32)
        In_q = In.astype(jnp.bfloat16).astype(jnp.float32)
        ref_q = jnp.einsum("ocgn,bcns->bogs", Psi_q[:, :, GnnPerms], In_q[:, :, NNsites],
                           precision=jax.lax.Precision.HIGHEST) + bias[None, :, :, None]
        assert jnp.allclose(out, ref_q, atol=1e-3, rtol=1e-3), name
        if check_f32:
            # Loose reference: full-f32 module semantics (bf16 MXU inputs in the kernel).
            ref = jnp.einsum("ocgn,bcns->bogs", Psi[:, :, GnnPerms], In[:, :, NNsites],
                             precision=jax.lax.Precision.HIGHEST) + bias[None, :, :, None]
            assert jnp.allclose(out, ref, atol=2e-1, rtol=5e-2), name

    # Case 1: periodic 1-D lattice (cyclic NNsites) -> fused in-kernel gather path.
    Nsites1, N_ngb1 = 16, 8
    NNsites_cyc = jnp.stack(
        [(jnp.arange(Nsites1, dtype=jnp.int32) + n) % Nsites1 for n in range(N_ngb1)], axis=0)
    run_case("fused", 2, 4, 4, Nsites1, N_ngb1, 8, NNsites_cyc,
             jax.random.fold_in(key, 1), check_f32=True)

    # Case 2: non-cyclic neighbor map, small sites -> fallback, batch folded into lanes,
    # single-K-step kernel (no scratch accumulator).
    Nsites2, N_ngb2 = 48, 16
    s2 = jnp.arange(Nsites2, dtype=jnp.int32)
    NNsites_gen2 = jnp.stack([(3 * s2 + 5 * n) % Nsites2 for n in range(N_ngb2)], axis=0)
    run_case("fallback_fold", 2, 4, 4, Nsites2, N_ngb2, 8, NNsites_gen2,
             jax.random.fold_in(key, 2))

    # Case 3: non-cyclic neighbor map, larger K / sites -> fallback, tiled-K accumulator path.
    Nsites3, N_ngb3 = 640, 16
    s3 = jnp.arange(Nsites3, dtype=jnp.int32)
    NNsites_gen3 = jnp.stack([(3 * s3 + 5 * n) % Nsites3 for n in range(N_ngb3)], axis=0)
    run_case("fallback_acc", 2, 40, 4, Nsites3, N_ngb3, 8, NNsites_gen3,
             jax.random.fold_in(key, 3))

    print("KERNEL_OK")
</pallas_src>

<mosaic_0001>
module attributes {stable_mosaic.version = 11 : i64} {
  func.func @_gconv_fused_kernel(%arg0: i32, %arg1: i32, %arg2: memref<32x64xbf16, #tpu.memory_space<vmem>>, %arg3: memref<32x1xf32, #tpu.memory_space<vmem>>, %arg4: memref<1x8x256xbf16, #tpu.memory_space<vmem>>, %arg5: memref<1x32x128xf32, #tpu.memory_space<vmem>>) attributes {dimension_semantics = [#tpu.dimension_semantics<parallel>, #tpu.dimension_semantics<parallel>], iteration_bounds = array<i64: 2, 1>, scalar_prefetch = 0 : i64, scratch_operands = 0 : i64, tpu.core_type = #tpu.core_type<tc>, window_params = [{pipeline_mode = #tpu.pipeline_mode<synchronous>, transform_indices = @transform_0, window_bounds = array<i64: 32, 64>}, {pipeline_mode = #tpu.pipeline_mode<synchronous>, transform_indices = @transform_1, window_bounds = array<i64: 32, 1>}, {transform_indices = @transform_2, window_bounds = array<i64: 1, 8, 256>}, {transform_indices = @transform_3, window_bounds = array<i64: 1, 32, 128>}]} {
    %c0 = arith.constant 0 : index
    %c0_0 = arith.constant 0 : index
    %c0_1 = arith.constant 0 : index
    %0 = vector.load %arg4[%c0, %c0_0, %c0_1] : memref<1x8x256xbf16, #tpu.memory_space<vmem>>, vector<1x8x128xbf16>
    %1 = vector.shape_cast %0 : vector<1x8x128xbf16> to vector<8x128xbf16>
    %c0_2 = arith.constant 0 : index
    %c0_3 = arith.constant 0 : index
    %c1 = arith.constant 1 : index
    %2 = vector.load %arg4[%c0_2, %c0_3, %c1] : memref<1x8x256xbf16, #tpu.memory_space<vmem>>, vector<1x8x128xbf16>
    %3 = vector.shape_cast %2 : vector<1x8x128xbf16> to vector<8x128xbf16>
    %c0_4 = arith.constant 0 : index
    %c0_5 = arith.constant 0 : index
    %c2 = arith.constant 2 : index
    %4 = vector.load %arg4[%c0_4, %c0_5, %c2] : memref<1x8x256xbf16, #tpu.memory_space<vmem>>, vector<1x8x128xbf16>
    %5 = vector.shape_cast %4 : vector<1x8x128xbf16> to vector<8x128xbf16>
    %c0_6 = arith.constant 0 : index
    %c0_7 = arith.constant 0 : index
    %c3 = arith.constant 3 : index
    %6 = vector.load %arg4[%c0_6, %c0_7, %c3] : memref<1x8x256xbf16, #tpu.memory_space<vmem>>, vector<1x8x128xbf16>
    %7 = vector.shape_cast %6 : vector<1x8x128xbf16> to vector<8x128xbf16>
    %c0_8 = arith.constant 0 : index
    %c0_9 = arith.constant 0 : index
    %c4 = arith.constant 4 : index
    %8 = vector.load %arg4[%c0_8, %c0_9, %c4] : memref<1x8x256xbf16, #tpu.memory_space<vmem>>, vector<1x8x128xbf16>
    %9 = vector.shape_cast %8 : vector<1x8x128xbf16> to vector<8x128xbf16>
    %c0_10 = arith.constant 0 : index
    %c0_11 = arith.constant 0 : index
    %c5 = arith.constant 5 : index
    %10 = vector.load %arg4[%c0_10, %c0_11, %c5] : memref<1x8x256xbf16, #tpu.memory_space<vmem>>, vector<1x8x128xbf16>
    %11 = vector.shape_cast %10 : vector<1x8x128xbf16> to vector<8x128xbf16>
    %c0_12 = arith.constant 0 : index
    %c0_13 = arith.constant 0 : index
    %c6 = arith.constant 6 : index
    %12 = vector.load %arg4[%c0_12, %c0_13, %c6] : memref<1x8x256xbf16, #tpu.memory_space<vmem>>, vector<1x8x128xbf16>
    %13 = vector.shape_cast %12 : vector<1x8x128xbf16> to vector<8x128xbf16>
    %c0_14 = arith.constant 0 : index
    %c0_15 = arith.constant 0 : index
    %c7 = arith.constant 7 : index
    %14 = vector.load %arg4[%c0_14, %c0_15, %c7] : memref<1x8x256xbf16, #tpu.memory_space<vmem>>, vector<1x8x128xbf16>
    %15 = vector.shape_cast %14 : vector<1x8x128xbf16> to vector<8x128xbf16>
    %16 = tpu.concatenate %1, %3, %5, %7, %9, %11, %13, %15 in 0 : vector<8x128xbf16>, vector<8x128xbf16>, vector<8x128xbf16>, vector<8x128xbf16>, vector<8x128xbf16>, vector<8x128xbf16>, vector<8x128xbf16>, vector<8x128xbf16> -> vector<64x128xbf16>
    %c0_16 = arith.constant 0 : index
    %c0_17 = arith.constant 0 : index
    %17 = vector.load %arg2[%c0_16, %c0_17] : memref<32x64xbf16, #tpu.memory_space<vmem>>, vector<32x64xbf16>
    %c0_18 = arith.constant 0 : index
    %c0_19 = arith.constant 0 : index
    %18 = vector.load %arg3[%c0_18, %c0_19] : memref<32x1xf32, #tpu.memory_space<vmem>>, vector<32x1xf32>
    %cst = arith.constant dense<0.000000e+00> : vector<32x128xf32>
    %19 = tpu.matmul %17, %16, %cst {dimension_numbers = #tpu.dot_dimension_numbers<[1], [0], [0], [1], [0, 0, 1, 1], [], []>} : vector<32x64xbf16>, vector<64x128xbf16>, vector<32x128xf32> -> vector<32x128xf32>
    %20 = vector.broadcast %18 : vector<32x1xf32> to vector<32x128xf32>
    %21 = arith.addf %19, %20 : vector<32x128xf32>
    %c0_20 = arith.constant 0 : index
    %c0_21 = arith.constant 0 : index
    %c0_22 = arith.constant 0 : index
    %22 = vector.load %arg5[%c0_20, %c0_21, %c0_22] : memref<1x32x128xf32, #tpu.memory_space<vmem>>, vector<1x32x128xf32>
    %23 = vector.shape_cast %22 : vector<1x32x128xf32> to vector<32x128xf32>
    %24 = vector.shape_cast %21 : vector<32x128xf32> to vector<1x32x128xf32>
    tpu.vector_store %arg5[%c0_20, %c0_21, %c0_22], %24 {strides = array<i32>} : memref<1x32x128xf32, #tpu.memory_space<vmem>>, vector<1x32x128xf32>,
    return
  }
  func.func @transform_0(%arg0: i32, %arg1: i32) -> (i32, i32) {
    %c0_i32 = arith.constant 0 : i32
    %c0_i32_0 = arith.constant 0 : i32
    %c0_i32_1 = arith.constant 0 : i32
    return %c0_i32, %c0_i32_0 : i32, i32
  }
  func.func @transform_1(%arg0: i32, %arg1: i32) -> (i32, i32) {
    %c0_i32 = arith.constant 0 : i32
    %c0_i32_0 = arith.constant 0 : i32
    %c0_i32_1 = arith.constant 0 : i32
    return %c0_i32, %c0_i32_0 : i32, i32
  }
  func.func @transform_2(%arg0: i32, %arg1: i32) -> (i32, i32, i32) {
    %c0_i32 = arith.constant 0 : i32
    %c0_i32_0 = arith.constant 0 : i32
    %c0_i32_1 = arith.constant 0 : i32
    return %arg0, %c0_i32, %c0_i32_0 : i32, i32, i32
  }
  func.func @transform_3(%arg0: i32, %arg1: i32) -> (i32, i32, i32) {
    %c0_i32 = arith.constant 0 : i32
    %c0_i32_0 = arith.constant 0 : i32
    return %arg0, %arg1, %c0_i32 : i32, i32, i32
  }
}

</mosaic_0001>

<llo_original>
// kernel: tpu_custom_call.1
$region0: #{tpu_custom_call.1}
  #allocation0 [shape = 'u32[]', space=smem, size = 0x4, offset = 0x4, fixed_abs, tag = 'smem constant byte address 0x4 - core index']
  #allocation1 [shape = 'u32[144,128]{1,0:T(1,128)}', space=vmem, size = 0x12000, scoped, tag = 'internal scratch']
  %s0 = inlined_call_operand.vmem [shape: bf16[32,64], index: 0, kind: input, shape index: {}]
  %s1 = inlined_call_operand.vmem [shape: f32[32,1], index: 1, kind: input, shape index: {}]
  %s2 = inlined_call_operand.vmem [shape: bf16[2,8,256], index: 2, kind: input, shape index: {}]
  %s3 = inlined_call_operand.hbm [shape: f32[2,32,128], index: 3, kind: output, shape index: {}]
  %s4 = sld [smem:[#allocation0]]
  $region45: #{tpu_custom_call.1} parent=0
    _
  %s6 = ssub.s32 1, %s4
  %s7 = scalar_select 0, %s6, %s4
  $region1: #{tpu_custom_call.1} parent=0
    #allocation2 [shape = 'u8[32768]{0}', space=vmem, size = 0x8000, scoped, tag = 'output window, operand 0']
    #allocation3 [shape = 's32[2]{0}', space=sflag, size = 0x8, scoped, tag = 'scoped memory for tpu_custom_call.1']
    %8 = vsyncpa [#allocation3], 0
    %s9 = scalar_lea.sflag [#allocation3], 1
    %10 = vsyncpa %s9, 0
    loop: start=0, step=1, limit=4
    $region2: #{tpu_custom_call.1} parent=1 // loop_pre_header
      _
    $region3: #{tpu_custom_call.1} parent=1 // loop_header
      %s12 = sphi 0, %s16
      %p13 = scmp.ge.s32.totalorder %s12, 4
      %s19 = sphi 0, %s31
      %s20 = sphi 0, %s27
      %s21 = sphi 0, %s19
      %s22 = sphi 0, %s20
      %s23 = sphi 0, %s21
      %s24 = sphi 0, %s22
      %s32 = sphi 0, %s32
      %s34 = sphi 0, %s32
      %s35 = sphi 0, %s34
      %s49 = sphi 0, %s35
      %s53 = sphi 0, %s53
      %s55 = sphi 0, %s53
      %s56 = sphi 0, %s55
      %s70 = sphi 0, %s56
      %s76 = sphi 0, %s78
      %s79 = sphi 0, %s76
      %s80 = sphi 0, %s79
      %s96 = sphi 0, %s80
      %s104 = sphi 0, %s106
      %s107 = sphi 0, %s104
      %s108 = sphi 0, %s107
      %s124 = sphi 0, %s108
    $region4: #{tpu_custom_call.1} parent=1 // loop_header_branch
      %15 = sbr.rel (%p13) target = $region8
    $region5: #{tpu_custom_call.1} parent=1 // loop_body
      %s17 = ssub.s32 %s12, 1
      %s18 = ssub.s32 %s12, 2
      %s25 = sadd.s32 1, %s20
      %p26 = scmp.ge.s32.totalorder %s25, 1
      %s27 = scalar_select %p26, 0, %s25
      %s28 = sadd.s32 1, %s19
      %s29 = scalar_select %p26, %s28, %s19
      %p30 = scmp.ge.s32.totalorder %s29, 2
      %s31 = scalar_select %p30, 0, %s29
      %s33 = sadd.s32 %s32, 1
      %p36 = scmp.eq.s32.totalorder %s12, 1
      %p37 = scmp.ne.s32.totalorder %s32, %s34
      %p38 = scmp.eq.s32.totalorder %s12, 0
      %p39 = por %p37, %p38
      %p40 = scmp.ne.s32.totalorder %s32, %s34
      %p41 = scmp.eq.s32.totalorder %s17, 1
      %p42 = por %p40, %p41
      %p43 = scmp.ne.s32.totalorder %s34, %s35
      %p44 = scmp.eq.s32.totalorder %s17, 0
      %p45 = por %p43, %p44
      %p46 = scmp.ne.s32.totalorder %s34, %s35
      %p47 = scmp.eq.s32.totalorder %s18, 1
      %p48 = por %p46, %p47
      %p50 = scmp.ne.s32.totalorder %s35, %s49
      %p51 = scmp.eq.s32.totalorder %s18, 0
      %p52 = por %p50, %p51
      %s54 = sadd.s32 %s53, 1
      %p57 = scmp.eq.s32.totalorder %s12, 1
      %p58 = scmp.ne.s32.totalorder %s53, %s55
      %p59 = scmp.eq.s32.totalorder %s12, 0
      %p60 = por %p58, %p59
      %p61 = scmp.ne.s32.totalorder %s53, %s55
      %p62 = scmp.eq.s32.totalorder %s17, 1
      %p63 = por %p61, %p62
      %p64 = scmp.ne.s32.totalorder %s55, %s56
      %p65 = scmp.eq.s32.totalorder %s17, 0
      %p66 = por %p64, %p65
      %p67 = scmp.ne.s32.totalorder %s55, %s56
      %p68 = scmp.eq.s32.totalorder %s18, 1
      %p69 = por %p67, %p68
      %p71 = scmp.ne.s32.totalorder %s56, %s70
      %p72 = scmp.eq.s32.totalorder %s18, 0
      %p73 = por %p71, %p72
      %s74 = ssub.s32 %s19, %s31
      %p75 = scmp.eq.s32.totalorder %s74, 0
      %s77 = sadd.s32 %s76, 1
      %s78 = scalar_select %p75, %s76, %s77
      %p81 = pneg %p75
      %p82 = scmp.eq.s32.totalorder %s12, 1
      %p83 = por %p81, %p82
      %p84 = scmp.ne.s32.totalorder %s76, %s79
      %p85 = scmp.eq.s32.totalorder %s12, 0
      %p86 = por %p84, %p85
      %p87 = scmp.ne.s32.totalorder %s76, %s79
      %p88 = scmp.eq.s32.totalorder %s17, 1
      %p89 = por %p87, %p88
      %p90 = scmp.ne.s32.totalorder %s79, %s80
      %p91 = scmp.eq.s32.totalorder %s17, 0
      %p92 = por %p90, %p91
      %p93 = scmp.ne.s32.totalorder %s79, %s80
      %p94 = scmp.eq.s32.totalorder %s18, 1
      %p95 = por %p93, %p94
      %p97 = scmp.ne.s32.totalorder %s80, %s96
      %p98 = scmp.eq.s32.totalorder %s18, 0
      %p99 = por %p97, %p98
      %s100 = ssub.s32 %s19, %s31
      %s101 = ssub.s32 %s20, %s27
      %s102 = sor.u32 %s100, %s101
      %p103 = scmp.eq.s32.totalorder %s102, 0
      %s105 = sadd.s32 %s104, 1
      %s106 = scalar_select %p103, %s104, %s105
      %p109 = pneg %p103
      %p110 = scmp.eq.s32.totalorder %s12, 1
      %p111 = por %p109, %p110
      %p112 = scmp.ne.s32.totalorder %s104, %s107
      %p113 = scmp.eq.s32.totalorder %s12, 0
      %p114 = por %p112, %p113
      %p115 = scmp.ne.s32.totalorder %s104, %s107
      %p116 = scmp.eq.s32.totalorder %s17, 1
      %p117 = por %p115, %p116
      %p118 = scmp.ne.s32.totalorder %s107, %s108
      %p119 = scmp.eq.s32.totalorder %s17, 0
      %p120 = por %p118, %p119
      %p121 = scmp.ne.s32.totalorder %s107, %s108
      %p122 = scmp.eq.s32.totalorder %s18, 1
      %p123 = por %p121, %p122
      %p125 = scmp.ne.s32.totalorder %s108, %s124
      %p126 = scmp.eq.s32.totalorder %s18, 0
      %p127 = por %p125, %p126
      %p128 = scmp.le.s32.totalorder 1, %s12
      %p129 = scmp.lt.s32.totalorder %s12, 3
      %p130 = pnand %p128, %p129
      %p131 = pneg %p130
      // Predicated region
      $region9: #{tpu_custom_call.1} parent=5 // pred_check
        _
      $region10: #{tpu_custom_call.1} parent=5 // pred_check_branch
        %133 = sbr.rel (%p130) target = $region12
      $region11: #{tpu_custom_call.1} parent=5 // pred_region
        %s134 = ssub.s32 %s12, 1
        // Predicated region
        $region13: #{tpu_custom_call.1} parent=11 // pred_check
          %p135 = pneg %p45
        $region14: #{tpu_custom_call.1} parent=11 // pred_check_branch
          %137 = sbr.rel (%p135) target = $region16
        $region15: #{tpu_custom_call.1} parent=11 // pred_region
          _
        $region16: #{tpu_custom_call.1} parent=11 // pred_fallthru
          _
        // Predicated region
        $region17: #{tpu_custom_call.1} parent=11 // pred_check
          %p138 = pneg %p66
        $region18: #{tpu_custom_call.1} parent=11 // pred_check_branch
          %140 = sbr.rel (%p138) target = $region20
        $region19: #{tpu_custom_call.1} parent=11 // pred_region
          _
        $region20: #{tpu_custom_call.1} parent=11 // pred_fallthru
          _
      $region12: #{tpu_custom_call.1} parent=5 // pred_fallthru
        _
      %p141 = scmp.lt.s32.totalorder %s12, 2
      // Predicated region
      $region21: #{tpu_custom_call.1} parent=5 // pred_check
        %p142 = pneg %p141
      $region22: #{tpu_custom_call.1} parent=5 // pred_check_branch
        %144 = sbr.rel (%p142) target = $region24
      $region23: #{tpu_custom_call.1} parent=5 // pred_region
        // Predicated region
        $region25: #{tpu_custom_call.1} parent=23 // pred_check
          %p145 = pneg %p86
        $region26: #{tpu_custom_call.1} parent=23 // pred_check_branch
          %147 = sbr.rel (%p145) target = $region28
        $region27: #{tpu_custom_call.1} parent=23 // pred_region
          %p148 = scmp.lt.s32.totalorder %s19, 1
          %s149 = scalar_select %p148, %s19, 1
          %s150 = smul.addr %s149, 2
          %s151 = smul.addr %s150, 4
          %s152 = scalar_lea.vmem %s2, %s151
        $region28: #{tpu_custom_call.1} parent=23 // pred_fallthru
          _
      $region24: #{tpu_custom_call.1} parent=5 // pred_fallthru
        _
      %p153 = scmp.le.s32.totalorder 1, %s12
      %p154 = scmp.lt.s32.totalorder %s12, 3
      %p155 = pnand %p153, %p154
      %p156 = pneg %p155
      // Predicated region
      $region29: #{tpu_custom_call.1} parent=5 // pred_check
        _
      $region30: #{tpu_custom_call.1} parent=5 // pred_check_branch
        %158 = sbr.rel (%p155) target = $region32
      $region31: #{tpu_custom_call.1} parent=5 // pred_region
        %s159 = ssub.s32 %s12, 1
        %p160 = pneg %p45
        %p161 = pneg %p42
        %p162 = pneg %p66
        %p163 = pneg %p63
        %p164 = scmp.lt.s32.totalorder %s21, 1
        %s165 = scalar_select %p164, %s21, 1
        %s166 = smul.addr %s165, 2
        %s167 = smul.addr %s166, 4
        %s168 = scalar_lea.vmem %s2, %s167
        %p169 = pneg %p92
        %p170 = pneg %p89
        %p171 = pneg %p120
        %p172 = pneg %p117
        %s173 = sand.u32 %s107, 1
        %s174 = scalar_lea.sflag [#allocation3], %s173
        %s175 = sand.u32 %s107, 1
        %s176 = smul.addr %s175, 32
        %s177 = scalar_lea.vmem [#allocation2], %s176
        %p178 = scmp.lt.s32.totalorder %s21, 1
        %s179 = scalar_select %p178, %s21, 1
        %s180 = smul.addr %s179, 2
        %s181 = smul.addr %s180, 4
        %s182 = scalar_lea.vmem %s2, %s181
        %s183 = smul.u32 4, %s22
        %v185 = vld [vmem:[%s182] sm:$0xf]
        %v186 = vld [vmem:[%s182] sm:$0xff]
        %v188 = vunpack.c.l.b16 %v186
        %v189 = vunpack.c.h.b16 %v186
        %v190 = vpack.c.b16 %v188, %v188
        %v191 = vpack.c.b16 %v189, %v189
        %192 = vrot.lane.b32.xlu0 %v190, 127
        %v193 = vpop.permute.xlu0 %192
        %194 = vrot.lane.b32.xlu0 %v191, 127
        %v195 = vpop.permute.xlu0 %194
        %vm196 = vcmask 1039360
        %v197 = vsel %vm196, %v193, %v195
        %198 = vrot.lane.b32.xlu0 %v190, 126
        %v199 = vpop.permute.xlu0 %198
        %200 = vrot.lane.b32.xlu0 %v191, 126
        %v201 = vpop.permute.xlu0 %200
        %vm202 = vcmask 1031168
        %v203 = vsel %vm202, %v199, %v201
        %204 = vrot.lane.b32.xlu0 %v190, 125
        %v205 = vpop.permute.xlu0 %204
        %206 = vrot.lane.b32.xlu0 %v191, 125
        %v207 = vpop.permute.xlu0 %206
        %vm208 = vcmask 1022976
        %v209 = vsel %vm208, %v205, %v207
        %210 = vrot.lane.b32.xlu0 %v190, 124
        %v211 = vpop.permute.xlu0 %210
        %212 = vrot.lane.b32.xlu0 %v191, 124
        %v213 = vpop.permute.xlu0 %212
        %vm214 = vcmask 1014784
        %v215 = vsel %vm214, %v211, %v213
        %216 = vrot.lane.b32.xlu0 %v190, 123
        %v217 = vpop.permute.xlu0 %216
        %218 = vrot.lane.b32.xlu0 %v191, 123
        %v219 = vpop.permute.xlu0 %218
        %vm220 = vcmask 1006592
        %v221 = vsel %vm220, %v217, %v219
        %222 = vrot.lane.b32.xlu0 %v190, 122
        %v223 = vpop.permute.xlu0 %222
        %224 = vrot.lane.b32.xlu0 %v191, 122
        %v225 = vpop.permute.xlu0 %224
        %vm226 = vcmask 998400
        %v227 = vsel %vm226, %v223, %v225
        %228 = vrot.lane.b32.xlu0 %v190, 121
        %v229 = vpop.permute.xlu0 %228
        %230 = vrot.lane.b32.xlu0 %v191, 121
        %v231 = vpop.permute.xlu0 %230
        %vm232 = vcmask 990208
        %v233 = vsel %vm232, %v229, %v231
        %vm234 = vcmask 1043456
        %v237 = vsel %vm234, %v185, %v197
        %v241 = vsel %vm234, %v203, %v209
        %v245 = vsel %vm234, %v215, %v221
        %v249 = vsel %vm234, %v227, %v233
        %v251 = vld [vmem:[%s0] sm:$0xf]
        %v252 = vld [vmem:[%s0 + $0x4] sm:$0xf]
        %v253 = vld [vmem:[%s0 + $0x8] sm:$0xf]
        %v254 = vld [vmem:[%s0 + $0xc] sm:$0xf]
        %v255 = vld [vmem:[%s1] sm:$0xff]
        %v256 = vld [vmem:[%s1 + $0x8] sm:$0xff]
        %v257 = vld [vmem:[%s1 + $0x10] sm:$0xff]
        %v258 = vld [vmem:[%s1 + $0x18] sm:$0xff]
        %260 = vset.pattern.permute.xlu0 0
        %261 = vperm.xlu0 %260, %v255
        %v262 = vpop.permute.xlu0 %261
        %265 = vset.pattern.permute.xlu0 0
        %266 = vperm.xlu0 %265, %v256
        %v267 = vpop.permute.xlu0 %266
        %270 = vset.pattern.permute.xlu0 0
        %271 = vperm.xlu0 %270, %v257
        %v272 = vpop.permute.xlu0 %271
        %275 = vset.pattern.permute.xlu0 0
        %276 = vperm.xlu0 %275, %v258
        %v277 = vpop.permute.xlu0 %276
        %v283 = vunpack.c.l.b16 %v251
        %v284 = vunpack.c.l.b16 %v252
        %v285 = vunpack.c.l.b16 %v253
        %v286 = vunpack.c.l.b16 %v254
        %v287 = vpack.c.b16 %v284, %v283
        %v288 = vpack.c.b16 %v286, %v285
        %vm289 = vcmask 523264
        %v291 = vsel %vm289, %v287, 0
        %v294 = vsel %vm289, %v288, 0
        %296 = vmatprep.subr.bf16.mxu0 0
        %297 = vmatpush1.bf16.msra.mxu0 %v237
        %298 = vmatprep.subr.bf16.mxu0 0
        %299 = vmatpush1.bf16.msra.mxu0 %v241
        %300 = vmatprep.subr.bf16.mxu0 0
        %301 = vmatpush1.bf16.msra.mxu0 %v245
        %302 = vmatprep.subr.bf16.mxu0 0
        %303 = vmatpush1.bf16.msra.mxu0 %v249
        %304 = vmatprep.subr.bf16.mxu0 0
        %305 = vmatpush1.bf16.msra.mxu0 0
        %306 = vmatprep.subr.bf16.mxu0 0
        %307 = vmatpush1.bf16.msra.mxu0 0
        %308 = vmatprep.subr.bf16.mxu0 0
        %309 = vmatpush1.bf16.msra.mxu0 0
        %310 = vmatprep.subr.bf16.mxu0 0
        %311 = vmatpush1.bf16.msra.mxu0 0
        %312 = vmatprep.subr.bf16.mxu0 0
        %313 = vmatpush1.bf16.msra.mxu0 0
        %314 = vmatprep.subr.bf16.mxu0 0
        %315 = vmatpush1.bf16.msra.mxu0 0
        %316 = vmatprep.subr.bf16.mxu0 0
        %317 = vmatpush1.bf16.msra.mxu0 0
        %318 = vmatprep.subr.bf16.mxu0 0
        %319 = vmatpush1.bf16.msra.mxu0 0
        %320 = vmatprep.subr.bf16.mxu0 0
        %321 = vmatpush1.bf16.msra.mxu0 0
        %322 = vmatprep.subr.bf16.mxu0 0
        %323 = vmatpush1.bf16.msra.mxu0 0
        %324 = vmatprep.subr.bf16.mxu0 0
        %325 = vmatpush1.bf16.msra.mxu0 0
        %326 = vmatprep.subr.bf16.mxu0 0
        %327 = vmatpush1.bf16.msra.mxu0 0
        %328 = vmatprep.mubr.bf16.mxu0 0
        %329 = vmatmul.mubr.bf16.gmra.mrb[0].mxu0 %v291
        %v330 = vpop.f32.mrb[0].mxu0
        %v331 = vadd.f32 %v262, %v330
        %v332 = vpop.f32.mrb[0].mxu0
        %v333 = vpop.f32.mrb[0].mxu0
        %v334 = vadd.f32 %v267, %v333
        %v335 = vpop.f32.mrb[0].mxu0
        %336 = vmatprep.mubr.bf16.mxu0 0
        %337 = vmatmul.mubr.bf16.gmra.mrb[0].mxu0 %v294
        %v338 = vpop.f32.mrb[0].mxu0
        %v339 = vadd.f32 %v272, %v338
        %v340 = vpop.f32.mrb[0].mxu0
        %v341 = vpop.f32.mrb[0].mxu0
        %v342 = vadd.f32 %v277, %v341
        %v343 = vpop.f32.mrb[0].mxu0
        %344 = vdwg.mxu0
        %345 = vst [vmem:[%s177] sm:$0xff] %v331
        %346 = vst [vmem:[%s177 + $0x8] sm:$0xff] %v334
        %347 = vst [vmem:[%s177 + $0x10] sm:$0xff] %v339
        %348 = vst [vmem:[%s177 + $0x18] sm:$0xff] %v342
        %s349 = sand.u32 %s107, 1
        %s350 = scalar_lea.sflag [#allocation3], %s349
        %s351 = sand.u32 %s107, 1
        %s352 = smul.addr %s351, 32
        %s353 = scalar_lea.vmem [#allocation2], %s352
        // Predicated region
        $region33: #{tpu_custom_call.1} parent=31 // pred_check
          %p354 = pneg %p117
        $region34: #{tpu_custom_call.1} parent=31 // pred_check_branch
          %356 = sbr.rel (%p354) target = $region36
        $region35: #{tpu_custom_call.1} parent=31 // pred_region
          %s357 = smul.u32 4, %s22
          %s359 = ssub.s32 512, 512
          %360 = vsyncadd %s350, %s359
          %s361 = smul.addr %s21, 4
          %s362 = sadd.s32 %s357, %s361
          %s363 = smul.addr %s362, 128
          %s364 = scalar_lea.hbm %s3, %s363
          %s365 = sshll.u32 %s353, 4
          %s366 = int_to_ptr.vmem [resolvable:$true] %s365
          %371 = dma.vmem_to_hbm [thread:$0]  %s366, 512, %s364, %s350, 128, 128, 8
        $region36: #{tpu_custom_call.1} parent=31 // pred_fallthru
          _
      $region32: #{tpu_custom_call.1} parent=5 // pred_fallthru
        _
      %p372 = scmp.le.s32.totalorder 2, %s12
      // Predicated region
      $region37: #{tpu_custom_call.1} parent=5 // pred_check
        %p373 = pneg %p372
      $region38: #{tpu_custom_call.1} parent=5 // pred_check_branch
        %375 = sbr.rel (%p373) target = $region40
      $region39: #{tpu_custom_call.1} parent=5 // pred_region
        %s376 = ssub.s32 %s12, 2
        // Predicated region
        $region41: #{tpu_custom_call.1} parent=39 // pred_check
          %p377 = pneg %p123
        $region42: #{tpu_custom_call.1} parent=39 // pred_check_branch
          %379 = sbr.rel (%p377) target = $region44
        $region43: #{tpu_custom_call.1} parent=39 // pred_region
          %s380 = sand.u32 %s108, 1
          %s381 = scalar_lea.sflag [#allocation3], %s380
          %s382 = sand.u32 %s108, 1
          %s383 = smul.addr %s382, 32
          %s384 = scalar_lea.vmem [#allocation2], %s383
          %385 = dma.done %s381, 512
        $region44: #{tpu_custom_call.1} parent=39 // pred_fallthru
          _
      $region40: #{tpu_custom_call.1} parent=5 // pred_fallthru
        _
    $region6: #{tpu_custom_call.1} parent=1 // loop_footer
      %s16 = sadd.s32 1, %s12
    $region7: #{tpu_custom_call.1} parent=1 // loop_footer_branch
      %11 = sbr.rel target = $region3
    $region8: #{tpu_custom_call.1} parent=1 // loop_exit
      _
    %386 = vsyncpa [#allocation3], 1
    %s387 = scalar_lea.sflag [#allocation3], 1
    %388 = vsyncpa %s387, 1

</llo_original>
